<compile_context>
chip_gen: v6e
topology: v6e:2x2x1
jax: 0.10.0
libtpu: 0.0.40
codegen_flags: <defaults>
</compile_context>

<pallas_src>
import functools

import jax
import jax.numpy as jnp
from jax import lax
from jax.experimental import pallas as pl
from jax.experimental.pallas import tpu as pltpu

# ---------------------------------------------------------------------------
# Problem configuration (small, consistent with a 4-D NCHW input module)
# ---------------------------------------------------------------------------
BATCH = 2
C_IN, H, W = 4, 16, 16
D = C_IN * H * W          # 1024 flattened feature dim (lane friendly)
N_TRAIN = 64              # synthetic "fitted" training set size
N_CLASSES = 3
K_NEIGHBORS = 5
WEIGHTS = "uniform"       # KNNWrapper default

TILE_B = 16               # query rows per grid step (multiple of bf16 sublane packing)
_LANE = 128
# Plain Python floats (jaxpr literals) -- NOT jnp scalars, so the kernel does
# not capture any traced constants.
_BIG = 3.0e38             # "removed neighbour" sentinel (finite, > pad value)
_PAD_DIST = 1.0e30        # key value for padded (fake) train columns

# bf16 train matrix / query tile (review item 3).  Set to jnp.float32 for
# bit-faithful neighbour ordering vs the f64 sklearn reference on near-ties.
TRAIN_DTYPE = jnp.bfloat16


def _round_up(x, m):
    return ((x + m - 1) // m) * m


def preprocess_data_jax(x):
    """NCHW -> NHWC -> (N, -1); mirrors the PyTorch preprocess_data helper."""
    if x.ndim == 4:
        n = x.shape[0]
        x = jnp.transpose(x, (0, 2, 3, 1)).reshape(n, -1)
    elif x.ndim == 3:
        n = x.shape[0]
        x = x.reshape(n, -1)
    return x


# ---------------------------------------------------------------------------
# Pallas kernel: (TILE_B, D) x (D, N_pad) MXU cross term (scaler/2x folded into
# the fit constants) + iterative k-nearest selection (lowest-index tie-break)
# + one hoisted vote matmul.  All tensors arrive lane/sublane-dense.
# ---------------------------------------------------------------------------
def knn_predict_proba_kernel(x_ref, trT_ref, t2_ref, onehot_ref, out_ref, *, k):
    # Neighbour-ordering key (||q||^2 dropped -- row constant, never returned):
    #   dist[n] = t2'[n] - x . trT'[:, n]  ==  ||t_n - scaler(x)||^2 - ||scaler(x)||^2
    cross = jnp.dot(x_ref[...], trT_ref[...],
                    preferred_element_type=jnp.float32)            # (B, N) f32 acc
    dist = t2_ref[...] - cross                                     # pad cols are huge

    b, n = dist.shape
    idx = lax.broadcasted_iota(jnp.int32, (b, n), 1).astype(jnp.float32)

    # k is tiny and static -> unrolled.  Each step extracts the current nearest
    # neighbour (ties broken by smallest training index, sklearn-style) into a
    # 0/1 mask; the class-vote matmul is done ONCE on the accumulated mask.
    sel_total = jnp.zeros((b, n), jnp.float32)
    for _ in range(k):
        min_d = jnp.min(dist, axis=-1, keepdims=True)              # (B, 1)
        cand = jnp.where(dist <= min_d, idx, float(n))             # first-occurrence argmin
        sel_idx = jnp.min(cand, axis=-1, keepdims=True)            # (B, 1)
        sel = idx == sel_idx                                       # (B, N)
        sel_total = sel_total + sel.astype(jnp.float32)
        dist = jnp.where(sel, _BIG, dist)                          # remove selected neighbour

    votes = jnp.dot(sel_total, onehot_ref[...],
                    preferred_element_type=jnp.float32)            # exact small ints
    out_ref[...] = votes * (1.0 / k)                               # lane-dense store


# ---------------------------------------------------------------------------
# One-time "fit": StandardScaler stats + train set, folded & padded into
# kernel constants (review items 1/2/3).  Nothing here runs per forward call.
# ---------------------------------------------------------------------------
def knn_fit(x_train, y_train, n_classes, *, k=K_NEIGHBORS, train_dtype=TRAIN_DTYPE):
    train_flat = preprocess_data_jax(x_train).astype(jnp.float32)   # (N, D)
    n_train, d = train_flat.shape
    assert k <= n_train, f"k={k} must be <= number of fitted samples ({n_train})"

    # StandardScaler.fit (population std; zero-variance features -> 1, as sklearn).
    mean = jnp.mean(train_flat, axis=0, keepdims=True)
    std = jnp.std(train_flat, axis=0, keepdims=True)
    std = jnp.where(std == 0.0, 1.0, std)
    inv_std = 1.0 / std
    train_scaled = (train_flat - mean) * inv_std                    # scaler.fit_transform

    # Fold scaler + factor 2 so the kernel works on the RAW query x:
    #   key[n] = ||t_n||^2 - 2 * scaler(x).t_n
    #          = (||t_n||^2 + 2*(mean*inv_std).t_n)  -  x . (2*inv_std*t_n)
    #          =            t2'[n]                   -  x @ trT'[:, n]
    trT_fold = 2.0 * (inv_std.reshape(d, 1) * train_scaled.T)        # (D, N)
    t2_fold = (jnp.sum(train_scaled * train_scaled, axis=-1)[None, :]
               + 2.0 * ((mean * inv_std) @ train_scaled.T))          # (1, N)

    n_pad = _round_up(max(n_train, _LANE), _LANE)                    # lane-dense train axis
    c_pad = _round_up(max(n_classes, _LANE), _LANE)                  # lane-dense output

    trT_pad = jnp.zeros((d, n_pad), jnp.float32).at[:, :n_train].set(trT_fold)
    trT_pad = trT_pad.astype(train_dtype)                            # bf16: halves dominant DMA
    t2_pad = jnp.full((1, n_pad), _PAD_DIST, jnp.float32)
    t2_pad = t2_pad.at[:, :n_train].set(t2_fold)                     # pad cols never win
    onehot = jax.nn.one_hot(y_train, n_classes, dtype=jnp.float32)   # exact 0/1 votes
    onehot_pad = jnp.zeros((n_pad, c_pad), jnp.float32)
    onehot_pad = onehot_pad.at[:n_train, :n_classes].set(onehot)

    return dict(trT=trT_pad, t2=t2_pad, onehot=onehot_pad,
                d=d, n_train=n_train, n_classes=n_classes, k=k)


# ---------------------------------------------------------------------------
# forward(): raw (N,C,H,W)/(N,H,W)/(N,D) input -> (N, n_classes) f32 probs.
# Only per-call work: flatten + pad the query tile; constants are reused.
# ---------------------------------------------------------------------------
def knn_forward(params, x):
    x_flat = preprocess_data_jax(x).astype(jnp.float32)
    batch, d = x_flat.shape
    assert d == params["d"]
    trT, t2, onehot = params["trT"], params["t2"], params["onehot"]
    n_pad, c_pad = trT.shape[1], onehot.shape[1]

    b_pad = _round_up(max(batch, TILE_B), TILE_B)
    x_pad = jnp.zeros((b_pad, d), trT.dtype).at[:batch, :].set(x_flat.astype(trT.dtype))

    out_pad = pl.pallas_call(
        functools.partial(knn_predict_proba_kernel, k=params["k"]),
        out_shape=jax.ShapeDtypeStruct((b_pad, c_pad), jnp.float32),
        grid_spec=pl.GridSpec(
            grid=(b_pad // TILE_B,),
            in_specs=[
                pl.BlockSpec((TILE_B, d), lambda i: (i, 0)),      # query tile streams
                pl.BlockSpec((d, n_pad), lambda i: (0, 0)),       # train constants stay
                pl.BlockSpec((1, n_pad), lambda i: (0, 0)),       #   VMEM-resident across
                pl.BlockSpec((n_pad, c_pad), lambda i: (0, 0)),   #   grid steps
            ],
            out_specs=pl.BlockSpec((TILE_B, c_pad), lambda i: (i, 0)),
        ),
        compiler_params=pltpu.CompilerParams(
            dimension_semantics=("parallel",)),                    # 2 TCs on v7x
    )(x_pad, trT, t2, onehot)
    return out_pad[:batch, :params["n_classes"]]


# ---------------------------------------------------------------------------
# Pure-JAX reference (exact f32, explicit scaler + true squared distances,
# elementwise -- no MXU precision ambiguity) for correctness checking.
# ---------------------------------------------------------------------------
def knn_reference(x, x_train, y_train, n_classes, k):
    train_flat = preprocess_data_jax(x_train).astype(jnp.float32)
    mean = jnp.mean(train_flat, axis=0, keepdims=True)
    std = jnp.std(train_flat, axis=0, keepdims=True)
    std = jnp.where(std == 0.0, 1.0, std)
    t = (train_flat - mean) / std
    xq = (preprocess_data_jax(x).astype(jnp.float32) - mean) / std
    d = jnp.sum((xq[:, None, :] - t[None, :, :]) ** 2, axis=-1)    # (B, N) exact f32
    _, nn_idx = lax.top_k(-d, k)                                   # stable: lowest index on ties
    onehot = jax.nn.one_hot(y_train[nn_idx], n_classes, dtype=jnp.float32)
    return jnp.sum(onehot, axis=1) / float(k)


if __name__ == "__main__":
    key = jax.random.PRNGKey(0)
    k_train, k_lbl, k_query = jax.random.split(key, 3)

    # ---- synthetic "fit" ----------------------------------------------------
    # A per-sample offset ramp keeps neighbour-distance gaps >> MXU / bf16
    # rounding, so the discrete vote fractions reproduce the exact-f32 reference
    # (review correctness note on bf16 near-ties).
    base = jax.random.normal(k_train, (N_TRAIN, C_IN, H, W), jnp.float32)
    ramp = 0.2 * jnp.arange(N_TRAIN, dtype=jnp.float32).reshape(N_TRAIN, 1, 1, 1)
    x_train = base + ramp
    y_train = jax.random.randint(k_lbl, (N_TRAIN,), 0, N_CLASSES, dtype=jnp.int32)

    params = knn_fit(x_train, y_train, N_CLASSES, k=K_NEIGHBORS)   # one-time prep

    # ---- forward ------------------------------------------------------------
    x_query = jax.random.normal(k_query, (BATCH, C_IN, H, W), jnp.float32)
    probs = knn_forward(params, x_query)
    probs = jax.block_until_ready(probs)

    ref = knn_reference(x_query, x_train, y_train, N_CLASSES, K_NEIGHBORS)

    assert probs.shape == (BATCH, N_CLASSES)
    assert probs.dtype == jnp.float32
    assert bool(jnp.allclose(jnp.sum(probs, axis=-1), 1.0, atol=1e-5))
    assert bool(jnp.allclose(probs, ref, atol=1e-5)), (probs, ref)

    print("KERNEL_OK")
</pallas_src>

<mosaic_0001>
module attributes {stable_mosaic.version = 11 : i64} {
  func.func @knn_predict_proba_kernel(%arg0: i32, %arg1: memref<16x1024xbf16, #tpu.memory_space<vmem>>, %arg2: memref<1024x128xbf16, #tpu.memory_space<vmem>>, %arg3: memref<1x128xf32, #tpu.memory_space<vmem>>, %arg4: memref<128x128xf32, #tpu.memory_space<vmem>>, %arg5: memref<16x128xf32, #tpu.memory_space<vmem>>) attributes {dimension_semantics = [#tpu.dimension_semantics<parallel>], iteration_bounds = array<i64: 1>, scalar_prefetch = 0 : i64, scratch_operands = 0 : i64, tpu.core_type = #tpu.core_type<tc>, window_params = [{transform_indices = @transform_0, window_bounds = array<i64: 16, 1024>}, {pipeline_mode = #tpu.pipeline_mode<synchronous>, transform_indices = @transform_1, window_bounds = array<i64: 1024, 128>}, {pipeline_mode = #tpu.pipeline_mode<synchronous>, transform_indices = @transform_2, window_bounds = array<i64: 1, 128>}, {pipeline_mode = #tpu.pipeline_mode<synchronous>, transform_indices = @transform_3, window_bounds = array<i64: 128, 128>}, {transform_indices = @transform_4, window_bounds = array<i64: 16, 128>}]} {
    %c0 = arith.constant 0 : index
    %c0_0 = arith.constant 0 : index
    %0 = vector.load %arg1[%c0, %c0_0] : memref<16x1024xbf16, #tpu.memory_space<vmem>>, vector<16x1024xbf16>
    %c0_1 = arith.constant 0 : index
    %c0_2 = arith.constant 0 : index
    %1 = vector.load %arg2[%c0_1, %c0_2] : memref<1024x128xbf16, #tpu.memory_space<vmem>>, vector<1024x128xbf16>
    %cst = arith.constant dense<0.000000e+00> : vector<16x128xf32>
    %2 = tpu.matmul %0, %1, %cst {dimension_numbers = #tpu.dot_dimension_numbers<[1], [0], [0], [1], [0, 0, 1, 1], [], []>} : vector<16x1024xbf16>, vector<1024x128xbf16>, vector<16x128xf32> -> vector<16x128xf32>
    %c0_3 = arith.constant 0 : index
    %c0_4 = arith.constant 0 : index
    %3 = vector.load %arg3[%c0_3, %c0_4] : memref<1x128xf32, #tpu.memory_space<vmem>>, vector<1x128xf32>
    %4 = vector.broadcast %3 : vector<1x128xf32> to vector<16x128xf32>
    %5 = arith.subf %4, %2 : vector<16x128xf32>
    %6 = tpu.iota {dimensions = array<i32: 1>} : vector<16x128xi32>
    %7 = arith.sitofp %6 : vector<16x128xi32> to vector<16x128xf32>
    %cst_5 = arith.constant 0.000000e+00 : f32
    %8 = vector.broadcast %cst_5 : f32 to vector<16x128xf32>
    %cst_6 = arith.constant dense<0x7F800000> : vector<16xf32>
    %9 = vector.multi_reduction <minimumf>, %5, %cst_6 [1] : vector<16x128xf32> to vector<16xf32>
    %10 = vector.shape_cast %9 : vector<16xf32> to vector<16x1xf32>
    %11 = vector.broadcast %10 : vector<16x1xf32> to vector<16x128xf32>
    %12 = arith.cmpf ole, %5, %11 : vector<16x128xf32>
    %cst_7 = arith.constant 1.280000e+02 : f32
    %13 = vector.broadcast %cst_7 : f32 to vector<16x128xf32>
    %14 = arith.select %12, %7, %13 : vector<16x128xi1>, vector<16x128xf32>
    %cst_8 = arith.constant dense<0x7F800000> : vector<16xf32>
    %15 = vector.multi_reduction <minimumf>, %14, %cst_8 [1] : vector<16x128xf32> to vector<16xf32>
    %16 = vector.shape_cast %15 : vector<16xf32> to vector<16x1xf32>
    %17 = vector.broadcast %16 : vector<16x1xf32> to vector<16x128xf32>
    %18 = arith.cmpf oeq, %7, %17 : vector<16x128xf32>
    %19 = arith.extui %18 : vector<16x128xi1> to vector<16x128xi32>
    %20 = arith.sitofp %19 : vector<16x128xi32> to vector<16x128xf32>
    %21 = arith.addf %8, %20 : vector<16x128xf32>
    %cst_9 = arith.constant 3.000000e+38 : f32
    %22 = vector.broadcast %cst_9 : f32 to vector<16x128xf32>
    %23 = arith.select %18, %22, %5 : vector<16x128xi1>, vector<16x128xf32>
    %cst_10 = arith.constant dense<0x7F800000> : vector<16xf32>
    %24 = vector.multi_reduction <minimumf>, %23, %cst_10 [1] : vector<16x128xf32> to vector<16xf32>
    %25 = vector.shape_cast %24 : vector<16xf32> to vector<16x1xf32>
    %26 = vector.broadcast %25 : vector<16x1xf32> to vector<16x128xf32>
    %27 = arith.cmpf ole, %23, %26 : vector<16x128xf32>
    %cst_11 = arith.constant 1.280000e+02 : f32
    %28 = vector.broadcast %cst_11 : f32 to vector<16x128xf32>
    %29 = arith.select %27, %7, %28 : vector<16x128xi1>, vector<16x128xf32>
    %cst_12 = arith.constant dense<0x7F800000> : vector<16xf32>
    %30 = vector.multi_reduction <minimumf>, %29, %cst_12 [1] : vector<16x128xf32> to vector<16xf32>
    %31 = vector.shape_cast %30 : vector<16xf32> to vector<16x1xf32>
    %32 = vector.broadcast %31 : vector<16x1xf32> to vector<16x128xf32>
    %33 = arith.cmpf oeq, %7, %32 : vector<16x128xf32>
    %34 = arith.extui %33 : vector<16x128xi1> to vector<16x128xi32>
    %35 = arith.sitofp %34 : vector<16x128xi32> to vector<16x128xf32>
    %36 = arith.addf %21, %35 : vector<16x128xf32>
    %cst_13 = arith.constant 3.000000e+38 : f32
    %37 = vector.broadcast %cst_13 : f32 to vector<16x128xf32>
    %38 = arith.select %33, %37, %23 : vector<16x128xi1>, vector<16x128xf32>
    %cst_14 = arith.constant dense<0x7F800000> : vector<16xf32>
    %39 = vector.multi_reduction <minimumf>, %38, %cst_14 [1] : vector<16x128xf32> to vector<16xf32>
    %40 = vector.shape_cast %39 : vector<16xf32> to vector<16x1xf32>
    %41 = vector.broadcast %40 : vector<16x1xf32> to vector<16x128xf32>
    %42 = arith.cmpf ole, %38, %41 : vector<16x128xf32>
    %cst_15 = arith.constant 1.280000e+02 : f32
    %43 = vector.broadcast %cst_15 : f32 to vector<16x128xf32>
    %44 = arith.select %42, %7, %43 : vector<16x128xi1>, vector<16x128xf32>
    %cst_16 = arith.constant dense<0x7F800000> : vector<16xf32>
    %45 = vector.multi_reduction <minimumf>, %44, %cst_16 [1] : vector<16x128xf32> to vector<16xf32>
    %46 = vector.shape_cast %45 : vector<16xf32> to vector<16x1xf32>
    %47 = vector.broadcast %46 : vector<16x1xf32> to vector<16x128xf32>
    %48 = arith.cmpf oeq, %7, %47 : vector<16x128xf32>
    %49 = arith.extui %48 : vector<16x128xi1> to vector<16x128xi32>
    %50 = arith.sitofp %49 : vector<16x128xi32> to vector<16x128xf32>
    %51 = arith.addf %36, %50 : vector<16x128xf32>
    %cst_17 = arith.constant 3.000000e+38 : f32
    %52 = vector.broadcast %cst_17 : f32 to vector<16x128xf32>
    %53 = arith.select %48, %52, %38 : vector<16x128xi1>, vector<16x128xf32>
    %cst_18 = arith.constant dense<0x7F800000> : vector<16xf32>
    %54 = vector.multi_reduction <minimumf>, %53, %cst_18 [1] : vector<16x128xf32> to vector<16xf32>
    %55 = vector.shape_cast %54 : vector<16xf32> to vector<16x1xf32>
    %56 = vector.broadcast %55 : vector<16x1xf32> to vector<16x128xf32>
    %57 = arith.cmpf ole, %53, %56 : vector<16x128xf32>
    %cst_19 = arith.constant 1.280000e+02 : f32
    %58 = vector.broadcast %cst_19 : f32 to vector<16x128xf32>
    %59 = arith.select %57, %7, %58 : vector<16x128xi1>, vector<16x128xf32>
    %cst_20 = arith.constant dense<0x7F800000> : vector<16xf32>
    %60 = vector.multi_reduction <minimumf>, %59, %cst_20 [1] : vector<16x128xf32> to vector<16xf32>
    %61 = vector.shape_cast %60 : vector<16xf32> to vector<16x1xf32>
    %62 = vector.broadcast %61 : vector<16x1xf32> to vector<16x128xf32>
    %63 = arith.cmpf oeq, %7, %62 : vector<16x128xf32>
    %64 = arith.extui %63 : vector<16x128xi1> to vector<16x128xi32>
    %65 = arith.sitofp %64 : vector<16x128xi32> to vector<16x128xf32>
    %66 = arith.addf %51, %65 : vector<16x128xf32>
    %cst_21 = arith.constant 3.000000e+38 : f32
    %67 = vector.broadcast %cst_21 : f32 to vector<16x128xf32>
    %68 = arith.select %63, %67, %53 : vector<16x128xi1>, vector<16x128xf32>
    %cst_22 = arith.constant dense<0x7F800000> : vector<16xf32>
    %69 = vector.multi_reduction <minimumf>, %68, %cst_22 [1] : vector<16x128xf32> to vector<16xf32>
    %70 = vector.shape_cast %69 : vector<16xf32> to vector<16x1xf32>
    %71 = vector.broadcast %70 : vector<16x1xf32> to vector<16x128xf32>
    %72 = arith.cmpf ole, %68, %71 : vector<16x128xf32>
    %cst_23 = arith.constant 1.280000e+02 : f32
    %73 = vector.broadcast %cst_23 : f32 to vector<16x128xf32>
    %74 = arith.select %72, %7, %73 : vector<16x128xi1>, vector<16x128xf32>
    %cst_24 = arith.constant dense<0x7F800000> : vector<16xf32>
    %75 = vector.multi_reduction <minimumf>, %74, %cst_24 [1] : vector<16x128xf32> to vector<16xf32>
    %76 = vector.shape_cast %75 : vector<16xf32> to vector<16x1xf32>
    %77 = vector.broadcast %76 : vector<16x1xf32> to vector<16x128xf32>
    %78 = arith.cmpf oeq, %7, %77 : vector<16x128xf32>
    %79 = arith.extui %78 : vector<16x128xi1> to vector<16x128xi32>
    %80 = arith.sitofp %79 : vector<16x128xi32> to vector<16x128xf32>
    %81 = arith.addf %66, %80 : vector<16x128xf32>
    %c0_25 = arith.constant 0 : index
    %c0_26 = arith.constant 0 : index
    %82 = vector.load %arg4[%c0_25, %c0_26] : memref<128x128xf32, #tpu.memory_space<vmem>>, vector<128x128xf32>
    %cst_27 = arith.constant dense<0.000000e+00> : vector<16x128xf32>
    %83 = tpu.matmul %81, %82, %cst_27 {dimension_numbers = #tpu.dot_dimension_numbers<[1], [0], [0], [1], [0, 0, 1, 1], [], []>} : vector<16x128xf32>, vector<128x128xf32>, vector<16x128xf32> -> vector<16x128xf32>
    %cst_28 = arith.constant 2.000000e-01 : f32
    %84 = vector.broadcast %cst_28 : f32 to vector<16x128xf32>
    %85 = arith.mulf %83, %84 : vector<16x128xf32>
    %c0_29 = arith.constant 0 : index
    %c0_30 = arith.constant 0 : index
    %86 = vector.load %arg5[%c0_29, %c0_30] : memref<16x128xf32, #tpu.memory_space<vmem>>, vector<16x128xf32>
    tpu.vector_store %arg5[%c0_29, %c0_30], %85 {strides = array<i32>} : memref<16x128xf32, #tpu.memory_space<vmem>>, vector<16x128xf32>,
    return
  }
  func.func @transform_0(%arg0: i32) -> (i32, i32) {
    %c0_i32 = arith.constant 0 : i32
    %c0_i32_0 = arith.constant 0 : i32
    return %arg0, %c0_i32 : i32, i32
  }
  func.func @transform_1(%arg0: i32) -> (i32, i32) {
    %c0_i32 = arith.constant 0 : i32
    %c0_i32_0 = arith.constant 0 : i32
    %c0_i32_1 = arith.constant 0 : i32
    return %c0_i32, %c0_i32_0 : i32, i32
  }
  func.func @transform_2(%arg0: i32) -> (i32, i32) {
    %c0_i32 = arith.constant 0 : i32
    %c0_i32_0 = arith.constant 0 : i32
    %c0_i32_1 = arith.constant 0 : i32
    return %c0_i32, %c0_i32_0 : i32, i32
  }
  func.func @transform_3(%arg0: i32) -> (i32, i32) {
    %c0_i32 = arith.constant 0 : i32
    %c0_i32_0 = arith.constant 0 : i32
    %c0_i32_1 = arith.constant 0 : i32
    return %c0_i32, %c0_i32_0 : i32, i32
  }
  func.func @transform_4(%arg0: i32) -> (i32, i32) {
    %c0_i32 = arith.constant 0 : i32
    %c0_i32_0 = arith.constant 0 : i32
    return %arg0, %c0_i32 : i32, i32
  }
}

</mosaic_0001>

<llo_original>
// kernel: tpu_custom_call.1
$region0: #{tpu_custom_call.1}
  #allocation0 [shape = 'u32[]', space=smem, size = 0x4, offset = 0x4, fixed_abs, tag = 'smem constant byte address 0x4 - core index']
  #allocation1 [shape = 'u32[144,128]{1,0:T(1,128)}', space=vmem, size = 0x12000, scoped, tag = 'internal scratch']
  %s0 = inlined_call_operand.hbm [shape: bf16[16,1024], index: 0, kind: input, shape index: {}]
  %s1 = inlined_call_operand.hbm [shape: bf16[1024,128], index: 1, kind: input, shape index: {}]
  %s2 = inlined_call_operand.vmem [shape: f32[1,128], index: 2, kind: input, shape index: {}]
  %s3 = inlined_call_operand.hbm [shape: f32[128,128], index: 3, kind: input, shape index: {}]
  %s4 = inlined_call_operand.hbm [shape: f32[16,128], index: 4, kind: output, shape index: {}]
  %s5 = sld [smem:[#allocation0]]
  $region38: #{tpu_custom_call.1} parent=0
    _
  %s7 = ssub.s32 1, %s5
  %s8 = scalar_select 0, %s7, %s5
  $region1: #{tpu_custom_call.1} parent=0
    #allocation2 [shape = 'u8[32768]{0}', space=vmem, size = 0x8000, scoped, tag = 'input window, operand 0, single buffered']
    #allocation3 [shape = 's32[1]{0}', space=sflag, size = 0x4, scoped, tag = 'scoped memory for tpu_custom_call.1']
    #allocation4 [shape = 's32[1]{0}', space=sflag, size = 0x4, scoped, tag = 'scoped memory for tpu_custom_call.1']
    #allocation5 [shape = 'u8[262144]{0}', space=vmem, size = 0x40000, scoped, tag = 'input window, operand 1, single buffered']
    #allocation6 [shape = 's32[1]{0}', space=sflag, size = 0x4, scoped, tag = 'scoped memory for tpu_custom_call.1']
    #allocation7 [shape = 'u8[65536]{0}', space=vmem, size = 0x10000, scoped, tag = 'input window, operand 3, single buffered']
    #allocation8 [shape = 'u8[8192]{0}', space=vmem, size = 0x2000, scoped, tag = 'output window, operand 0, single buffered']
    %9 = vsyncpa [#allocation3], 0
    %10 = vsyncpa [#allocation6], 0
    %11 = vsyncpa [#allocation4], 0
    // Predicated region
    $region2: #{tpu_custom_call.1} parent=1 // pred_check
      _
    $region3: #{tpu_custom_call.1} parent=1 // pred_check_branch
      %13 = sbr.rel (0) target = $region5
    $region4: #{tpu_custom_call.1} parent=1 // pred_region
      %s15 = ssub.s32 1024, 1024
      %16 = vsyncadd [#allocation3], %s15
      %s17 = sshll.u32 [#allocation2], 4
      %s18 = int_to_ptr.vmem [resolvable:$true] %s17
      %23 = dma.hbm_to_vmem [thread:$0]  %s0, 1024, %s18, [#allocation3], 512, 512, 32
    $region5: #{tpu_custom_call.1} parent=1 // pred_fallthru
      _
    // Predicated region
    $region6: #{tpu_custom_call.1} parent=1 // pred_check
      _
    $region7: #{tpu_custom_call.1} parent=1 // pred_check_branch
      %25 = sbr.rel (0) target = $region9
    $region8: #{tpu_custom_call.1} parent=1 // pred_region
      %s27 = ssub.s32 8192, 8192
      %28 = vsyncadd [#allocation6], %s27
      %s29 = sshll.u32 [#allocation5], 4
      %s30 = int_to_ptr.vmem [resolvable:$true] %s29
      %35 = dma.hbm_to_vmem [thread:$0]  %s1, 8192, %s30, [#allocation6], 64, 64, 4
    $region9: #{tpu_custom_call.1} parent=1 // pred_fallthru
      _
    // Predicated region
    $region10: #{tpu_custom_call.1} parent=1 // pred_check
      _
    $region11: #{tpu_custom_call.1} parent=1 // pred_check_branch
      %37 = sbr.rel (0) target = $region13
    $region12: #{tpu_custom_call.1} parent=1 // pred_region
      _
    $region13: #{tpu_custom_call.1} parent=1 // pred_fallthru
      _
    // Predicated region
    $region14: #{tpu_custom_call.1} parent=1 // pred_check
      _
    $region15: #{tpu_custom_call.1} parent=1 // pred_check_branch
      %39 = sbr.rel (0) target = $region17
    $region16: #{tpu_custom_call.1} parent=1 // pred_region
      %s41 = ssub.s32 2048, 2048
      %42 = vsyncadd [#allocation6], %s41
      %s43 = sshll.u32 [#allocation7], 4
      %s44 = int_to_ptr.vmem [resolvable:$true] %s43
      %49 = dma.hbm_to_vmem [thread:$0]  %s3, 2048, %s44, [#allocation6], 128, 128, 8
    $region17: #{tpu_custom_call.1} parent=1 // pred_fallthru
      _
    // Predicated region
    $region18: #{tpu_custom_call.1} parent=1 // pred_check
      _
    $region19: #{tpu_custom_call.1} parent=1 // pred_check_branch
      %51 = sbr.rel (0) target = $region21
    $region20: #{tpu_custom_call.1} parent=1 // pred_region
      %52 = dma.done [#allocation3], 1024
    $region21: #{tpu_custom_call.1} parent=1 // pred_fallthru
      _
    // Predicated region
    $region22: #{tpu_custom_call.1} parent=1 // pred_check
      _
    $region23: #{tpu_custom_call.1} parent=1 // pred_check_branch
      %54 = sbr.rel (0) target = $region25
    $region24: #{tpu_custom_call.1} parent=1 // pred_region
      %55 = dma.done [#allocation6], 8192
    $region25: #{tpu_custom_call.1} parent=1 // pred_fallthru
      _
    // Predicated region
    $region26: #{tpu_custom_call.1} parent=1 // pred_check
      _
    $region27: #{tpu_custom_call.1} parent=1 // pred_check_branch
      %57 = sbr.rel (0) target = $region29
    $region28: #{tpu_custom_call.1} parent=1 // pred_region
      %58 = dma.done [#allocation6], 2048
    $region29: #{tpu_custom_call.1} parent=1 // pred_fallthru
      _
    %v60 = vld [vmem:[#allocation2] sm:$0xff]
    %v61 = vld [vmem:[#allocation2 + $0x8] sm:$0xff]
    %v62 = vld [vmem:[#allocation2 + $0x10] sm:$0xff]
    %v63 = vld [vmem:[#allocation2 + $0x18] sm:$0xff]
    %v64 = vld [vmem:[#allocation2 + $0x20] sm:$0xff]
    %v65 = vld [vmem:[#allocation2 + $0x28] sm:$0xff]
    %v66 = vld [vmem:[#allocation2 + $0x30] sm:$0xff]
    %v67 = vld [vmem:[#allocation2 + $0x38] sm:$0xff]
    %v68 = vld [vmem:[#allocation5] sm:$0xf]
    %v69 = vld [vmem:[#allocation5 + $0x4] sm:$0xf]
    %v70 = vld [vmem:[#allocation5 + $0x8] sm:$0xf]
    %v71 = vld [vmem:[#allocation5 + $0xc] sm:$0xf]
    %v72 = vld [vmem:[#allocation5 + $0x10] sm:$0xf]
    %v73 = vld [vmem:[#allocation5 + $0x14] sm:$0xf]
    %v74 = vld [vmem:[#allocation5 + $0x18] sm:$0xf]
    %v75 = vld [vmem:[#allocation5 + $0x1c] sm:$0xf]
    %v76 = vld [vmem:[#allocation5 + $0x20] sm:$0xf]
    %v77 = vld [vmem:[#allocation5 + $0x24] sm:$0xf]
    %v78 = vld [vmem:[#allocation5 + $0x28] sm:$0xf]
    %v79 = vld [vmem:[#allocation5 + $0x2c] sm:$0xf]
    %v80 = vld [vmem:[#allocation5 + $0x30] sm:$0xf]
    %v81 = vld [vmem:[#allocation5 + $0x34] sm:$0xf]
    %v82 = vld [vmem:[#allocation5 + $0x38] sm:$0xf]
    %v83 = vld [vmem:[#allocation5 + $0x3c] sm:$0xf]
    %v84 = vld [vmem:[#allocation5 + $0x40] sm:$0xf]
    %v85 = vld [vmem:[#allocation5 + $0x44] sm:$0xf]
    %v86 = vld [vmem:[#allocation5 + $0x48] sm:$0xf]
    %v87 = vld [vmem:[#allocation5 + $0x4c] sm:$0xf]
    %v88 = vld [vmem:[#allocation5 + $0x50] sm:$0xf]
    %v89 = vld [vmem:[#allocation5 + $0x54] sm:$0xf]
    %v90 = vld [vmem:[#allocation5 + $0x58] sm:$0xf]
    %v91 = vld [vmem:[#allocation5 + $0x5c] sm:$0xf]
    %v92 = vld [vmem:[#allocation5 + $0x60] sm:$0xf]
    %v93 = vld [vmem:[#allocation5 + $0x64] sm:$0xf]
    %v94 = vld [vmem:[#allocation5 + $0x68] sm:$0xf]
    %v95 = vld [vmem:[#allocation5 + $0x6c] sm:$0xf]
    %v96 = vld [vmem:[#allocation5 + $0x70] sm:$0xf]
    %v97 = vld [vmem:[#allocation5 + $0x74] sm:$0xf]
    %v98 = vld [vmem:[#allocation5 + $0x78] sm:$0xf]
    %v99 = vld [vmem:[#allocation5 + $0x7c] sm:$0xf]
    %v100 = vld [vmem:[#allocation5 + $0x80] sm:$0xf]
    %v101 = vld [vmem:[#allocation5 + $0x84] sm:$0xf]
    %v102 = vld [vmem:[#allocation5 + $0x88] sm:$0xf]
    %v103 = vld [vmem:[#allocation5 + $0x8c] sm:$0xf]
    %v104 = vld [vmem:[#allocation5 + $0x90] sm:$0xf]
    %v105 = vld [vmem:[#allocation5 + $0x94] sm:$0xf]
    %v106 = vld [vmem:[#allocation5 + $0x98] sm:$0xf]
    %v107 = vld [vmem:[#allocation5 + $0x9c] sm:$0xf]
    %v108 = vld [vmem:[#allocation5 + $0xa0] sm:$0xf]
    %v109 = vld [vmem:[#allocation5 + $0xa4] sm:$0xf]
    %v110 = vld [vmem:[#allocation5 + $0xa8] sm:$0xf]
    %v111 = vld [vmem:[#allocation5 + $0xac] sm:$0xf]
    %v112 = vld [vmem:[#allocation5 + $0xb0] sm:$0xf]
    %v113 = vld [vmem:[#allocation5 + $0xb4] sm:$0xf]
    %v114 = vld [vmem:[#allocation5 + $0xb8] sm:$0xf]
    %v115 = vld [vmem:[#allocation5 + $0xbc] sm:$0xf]
    %v116 = vld [vmem:[#allocation5 + $0xc0] sm:$0xf]
    %v117 = vld [vmem:[#allocation5 + $0xc4] sm:$0xf]
    %v118 = vld [vmem:[#allocation5 + $0xc8] sm:$0xf]
    %v119 = vld [vmem:[#allocation5 + $0xcc] sm:$0xf]
    %v120 = vld [vmem:[#allocation5 + $0xd0] sm:$0xf]
    %v121 = vld [vmem:[#allocation5 + $0xd4] sm:$0xf]
    %v122 = vld [vmem:[#allocation5 + $0xd8] sm:$0xf]
    %v123 = vld [vmem:[#allocation5 + $0xdc] sm:$0xf]
    %v124 = vld [vmem:[#allocation5 + $0xe0] sm:$0xf]
    %v125 = vld [vmem:[#allocation5 + $0xe4] sm:$0xf]
    %v126 = vld [vmem:[#allocation5 + $0xe8] sm:$0xf]
    %v127 = vld [vmem:[#allocation5 + $0xec] sm:$0xf]
    %v128 = vld [vmem:[#allocation5 + $0xf0] sm:$0xf]
    %v129 = vld [vmem:[#allocation5 + $0xf4] sm:$0xf]
    %v130 = vld [vmem:[#allocation5 + $0xf8] sm:$0xf]
    %v131 = vld [vmem:[#allocation5 + $0xfc] sm:$0xf]
    %v132 = vld [vmem:[#allocation5 + $0x100] sm:$0xf]
    %v133 = vld [vmem:[#allocation5 + $0x104] sm:$0xf]
    %v134 = vld [vmem:[#allocation5 + $0x108] sm:$0xf]
    %v135 = vld [vmem:[#allocation5 + $0x10c] sm:$0xf]
    %v136 = vld [vmem:[#allocation5 + $0x110] sm:$0xf]
    %v137 = vld [vmem:[#allocation5 + $0x114] sm:$0xf]
    %v138 = vld [vmem:[#allocation5 + $0x118] sm:$0xf]
    %v139 = vld [vmem:[#allocation5 + $0x11c] sm:$0xf]
    %v140 = vld [vmem:[#allocation5 + $0x120] sm:$0xf]
    %v141 = vld [vmem:[#allocation5 + $0x124] sm:$0xf]
    %v142 = vld [vmem:[#allocation5 + $0x128] sm:$0xf]
    %v143 = vld [vmem:[#allocation5 + $0x12c] sm:$0xf]
    %v144 = vld [vmem:[#allocation5 + $0x130] sm:$0xf]
    %v145 = vld [vmem:[#allocation5 + $0x134] sm:$0xf]
    %v146 = vld [vmem:[#allocation5 + $0x138] sm:$0xf]
    %v147 = vld [vmem:[#allocation5 + $0x13c] sm:$0xf]
    %v148 = vld [vmem:[#allocation5 + $0x140] sm:$0xf]
    %v149 = vld [vmem:[#allocation5 + $0x144] sm:$0xf]
    %v150 = vld [vmem:[#allocation5 + $0x148] sm:$0xf]
    %v151 = vld [vmem:[#allocation5 + $0x14c] sm:$0xf]
    %v152 = vld [vmem:[#allocation5 + $0x150] sm:$0xf]
    %v153 = vld [vmem:[#allocation5 + $0x154] sm:$0xf]
    %v154 = vld [vmem:[#allocation5 + $0x158] sm:$0xf]
    %v155 = vld [vmem:[#allocation5 + $0x15c] sm:$0xf]
    %v156 = vld [vmem:[#allocation5 + $0x160] sm:$0xf]
    %v157 = vld [vmem:[#allocation5 + $0x164] sm:$0xf]
    %v158 = vld [vmem:[#allocation5 + $0x168] sm:$0xf]
    %v159 = vld [vmem:[#allocation5 + $0x16c] sm:$0xf]
    %v160 = vld [vmem:[#allocation5 + $0x170] sm:$0xf]
    %v161 = vld [vmem:[#allocation5 + $0x174] sm:$0xf]
    %v162 = vld [vmem:[#allocation5 + $0x178] sm:$0xf]
    %v163 = vld [vmem:[#allocation5 + $0x17c] sm:$0xf]
    %v164 = vld [vmem:[#allocation5 + $0x180] sm:$0xf]
    %v165 = vld [vmem:[#allocation5 + $0x184] sm:$0xf]
    %v166 = vld [vmem:[#allocation5 + $0x188] sm:$0xf]
    %v167 = vld [vmem:[#allocation5 + $0x18c] sm:$0xf]
    %v168 = vld [vmem:[#allocation5 + $0x190] sm:$0xf]
    %v169 = vld [vmem:[#allocation5 + $0x194] sm:$0xf]
    %v170 = vld [vmem:[#allocation5 + $0x198] sm:$0xf]
    %v171 = vld [vmem:[#allocation5 + $0x19c] sm:$0xf]
    %v172 = vld [vmem:[#allocation5 + $0x1a0] sm:$0xf]
    %v173 = vld [vmem:[#allocation5 + $0x1a4] sm:$0xf]
    %v174 = vld [vmem:[#allocation5 + $0x1a8] sm:$0xf]
    %v175 = vld [vmem:[#allocation5 + $0x1ac] sm:$0xf]
    %v176 = vld [vmem:[#allocation5 + $0x1b0] sm:$0xf]
    %v177 = vld [vmem:[#allocation5 + $0x1b4] sm:$0xf]
    %v178 = vld [vmem:[#allocation5 + $0x1b8] sm:$0xf]
    %v179 = vld [vmem:[#allocation5 + $0x1bc] sm:$0xf]
    %v180 = vld [vmem:[#allocation5 + $0x1c0] sm:$0xf]
    %v181 = vld [vmem:[#allocation5 + $0x1c4] sm:$0xf]
    %v182 = vld [vmem:[#allocation5 + $0x1c8] sm:$0xf]
    %v183 = vld [vmem:[#allocation5 + $0x1cc] sm:$0xf]
    %v184 = vld [vmem:[#allocation5 + $0x1d0] sm:$0xf]
    %v185 = vld [vmem:[#allocation5 + $0x1d4] sm:$0xf]
    %v186 = vld [vmem:[#allocation5 + $0x1d8] sm:$0xf]
    %v187 = vld [vmem:[#allocation5 + $0x1dc] sm:$0xf]
    %v188 = vld [vmem:[#allocation5 + $0x1e0] sm:$0xf]
    %v189 = vld [vmem:[#allocation5 + $0x1e4] sm:$0xf]
    %v190 = vld [vmem:[#allocation5 + $0x1e8] sm:$0xf]
    %v191 = vld [vmem:[#allocation5 + $0x1ec] sm:$0xf]
    %v192 = vld [vmem:[#allocation5 + $0x1f0] sm:$0xf]
    %v193 = vld [vmem:[#allocation5 + $0x1f4] sm:$0xf]
    %v194 = vld [vmem:[#allocation5 + $0x1f8] sm:$0xf]
    %v195 = vld [vmem:[#allocation5 + $0x1fc] sm:$0xf]
    %v204 = vunpack.c.l.b16 %v60
    %v205 = vunpack.c.h.b16 %v60
    %v206 = vunpack.c.l.b16 %v61
    %v207 = vunpack.c.h.b16 %v61
    %v208 = vunpack.c.l.b16 %v62
    %v209 = vunpack.c.h.b16 %v62
    %v210 = vunpack.c.l.b16 %v63
    %v211 = vunpack.c.h.b16 %v63
    %v212 = vunpack.c.l.b16 %v64
    %v213 = vunpack.c.h.b16 %v64
    %v214 = vunpack.c.l.b16 %v65
    %v215 = vunpack.c.h.b16 %v65
    %v216 = vunpack.c.l.b16 %v66
    %v217 = vunpack.c.h.b16 %v66
    %v218 = vunpack.c.l.b16 %v67
    %v219 = vunpack.c.h.b16 %v67
    %v220 = vpack.c.b16 %v212, %v204
    %v221 = vpack.c.b16 %v213, %v205
    %v222 = vpack.c.b16 %v214, %v206
    %v223 = vpack.c.b16 %v215, %v207
    %v224 = vpack.c.b16 %v216, %v208
    %v225 = vpack.c.b16 %v217, %v209
    %v226 = vpack.c.b16 %v218, %v210
    %v227 = vpack.c.b16 %v219, %v211
    %v364 = vunpack.c.l.b16 %v68
    %v365 = vunpack.c.l.b16 %v69
    %v366 = vunpack.c.l.b16 %v70
    %v367 = vunpack.c.l.b16 %v71
    %v368 = vunpack.c.l.b16 %v72
    %v369 = vunpack.c.l.b16 %v73
    %v370 = vunpack.c.l.b16 %v74
    %v371 = vunpack.c.l.b16 %v75
    %v372 = vunpack.c.l.b16 %v76
    %v373 = vunpack.c.l.b16 %v77
    %v374 = vunpack.c.l.b16 %v78
    %v375 = vunpack.c.l.b16 %v79
    %v376 = vunpack.c.l.b16 %v80
    %v377 = vunpack.c.l.b16 %v81
    %v378 = vunpack.c.l.b16 %v82
    %v379 = vunpack.c.l.b16 %v83
    %v380 = vunpack.c.l.b16 %v84
    %v381 = vunpack.c.l.b16 %v85
    %v382 = vunpack.c.l.b16 %v86
    %v383 = vunpack.c.l.b16 %v87
    %v384 = vunpack.c.l.b16 %v88
    %v385 = vunpack.c.l.b16 %v89
    %v386 = vunpack.c.l.b16 %v90
    %v387 = vunpack.c.l.b16 %v91
    %v388 = vunpack.c.l.b16 %v92
    %v389 = vunpack.c.l.b16 %v93
    %v390 = vunpack.c.l.b16 %v94
    %v391 = vunpack.c.l.b16 %v95
    %v392 = vunpack.c.l.b16 %v96
    %v393 = vunpack.c.l.b16 %v97
    %v394 = vunpack.c.l.b16 %v98
    %v395 = vunpack.c.l.b16 %v99
    %v396 = vunpack.c.l.b16 %v100
    %v397 = vunpack.c.l.b16 %v101
    %v398 = vunpack.c.l.b16 %v102
    %v399 = vunpack.c.l.b16 %v103
    %v400 = vunpack.c.l.b16 %v104
    %v401 = vunpack.c.l.b16 %v105
    %v402 = vunpack.c.l.b16 %v106
    %v403 = vunpack.c.l.b16 %v107
    %v404 = vunpack.c.l.b16 %v108
    %v405 = vunpack.c.l.b16 %v109
    %v406 = vunpack.c.l.b16 %v110
    %v407 = vunpack.c.l.b16 %v111
    %v408 = vunpack.c.l.b16 %v112
    %v409 = vunpack.c.l.b16 %v113
    %v410 = vunpack.c.l.b16 %v114
    %v411 = vunpack.c.l.b16 %v115
    %v412 = vunpack.c.l.b16 %v116
    %v413 = vunpack.c.l.b16 %v117
    %v414 = vunpack.c.l.b16 %v118
    %v415 = vunpack.c.l.b16 %v119
    %v416 = vunpack.c.l.b16 %v120
    %v417 = vunpack.c.l.b16 %v121
    %v418 = vunpack.c.l.b16 %v122
    %v419 = vunpack.c.l.b16 %v123
    %v420 = vunpack.c.l.b16 %v124
    %v421 = vunpack.c.l.b16 %v125
    %v422 = vunpack.c.l.b16 %v126
    %v423 = vunpack.c.l.b16 %v127
    %v424 = vunpack.c.l.b16 %v128
    %v425 = vunpack.c.l.b16 %v129
    %v426 = vunpack.c.l.b16 %v130
    %v427 = vunpack.c.l.b16 %v131
    %v428 = vunpack.c.l.b16 %v132
    %v429 = vunpack.c.l.b16 %v133
    %v430 = vunpack.c.l.b16 %v134
    %v431 = vunpack.c.l.b16 %v135
    %v432 = vunpack.c.l.b16 %v136
    %v433 = vunpack.c.l.b16 %v137
    %v434 = vunpack.c.l.b16 %v138
    %v435 = vunpack.c.l.b16 %v139
    %v436 = vunpack.c.l.b16 %v140
    %v437 = vunpack.c.l.b16 %v141
    %v438 = vunpack.c.l.b16 %v142
    %v439 = vunpack.c.l.b16 %v143
    %v440 = vunpack.c.l.b16 %v144
    %v441 = vunpack.c.l.b16 %v145
    %v442 = vunpack.c.l.b16 %v146
    %v443 = vunpack.c.l.b16 %v147
    %v444 = vunpack.c.l.b16 %v148
    %v445 = vunpack.c.l.b16 %v149
    %v446 = vunpack.c.l.b16 %v150
    %v447 = vunpack.c.l.b16 %v151
    %v448 = vunpack.c.l.b16 %v152
    %v449 = vunpack.c.l.b16 %v153
    %v450 = vunpack.c.l.b16 %v154
    %v451 = vunpack.c.l.b16 %v155
    %v452 = vunpack.c.l.b16 %v156
    %v453 = vunpack.c.l.b16 %v157
    %v454 = vunpack.c.l.b16 %v158
    %v455 = vunpack.c.l.b16 %v159
    %v456 = vunpack.c.l.b16 %v160
    %v457 = vunpack.c.l.b16 %v161
    %v458 = vunpack.c.l.b16 %v162
    %v459 = vunpack.c.l.b16 %v163
    %v460 = vunpack.c.l.b16 %v164
    %v461 = vunpack.c.l.b16 %v165
    %v462 = vunpack.c.l.b16 %v166
    %v463 = vunpack.c.l.b16 %v167
    %v464 = vunpack.c.l.b16 %v168
    %v465 = vunpack.c.l.b16 %v169
    %v466 = vunpack.c.l.b16 %v170
    %v467 = vunpack.c.l.b16 %v171
    %v468 = vunpack.c.l.b16 %v172
    %v469 = vunpack.c.l.b16 %v173
    %v470 = vunpack.c.l.b16 %v174
    %v471 = vunpack.c.l.b16 %v175
    %v472 = vunpack.c.l.b16 %v176
    %v473 = vunpack.c.l.b16 %v177
    %v474 = vunpack.c.l.b16 %v178
    %v475 = vunpack.c.l.b16 %v179
    %v476 = vunpack.c.l.b16 %v180
    %v477 = vunpack.c.l.b16 %v181
    %v478 = vunpack.c.l.b16 %v182
    %v479 = vunpack.c.l.b16 %v183
    %v480 = vunpack.c.l.b16 %v184
    %v481 = vunpack.c.l.b16 %v185
    %v482 = vunpack.c.l.b16 %v186
    %v483 = vunpack.c.l.b16 %v187
    %v484 = vunpack.c.l.b16 %v188
    %v485 = vunpack.c.l.b16 %v189
    %v486 = vunpack.c.l.b16 %v190
    %v487 = vunpack.c.l.b16 %v191
    %v488 = vunpack.c.l.b16 %v192
    %v489 = vunpack.c.l.b16 %v193
    %v490 = vunpack.c.l.b16 %v194
    %v491 = vunpack.c.l.b16 %v195
    %v492 = vpack.c.b16 %v365, %v364
    %v493 = vpack.c.b16 %v367, %v366
    %v494 = vpack.c.b16 %v369, %v368
    %v495 = vpack.c.b16 %v371, %v370
    %v496 = vpack.c.b16 %v373, %v372
    %v497 = vpack.c.b16 %v375, %v374
    %v498 = vpack.c.b16 %v377, %v376
    %v499 = vpack.c.b16 %v379, %v378
    %v500 = vpack.c.b16 %v381, %v380
    %v501 = vpack.c.b16 %v383, %v382
    %v502 = vpack.c.b16 %v385, %v384
    %v503 = vpack.c.b16 %v387, %v386
    %v504 = vpack.c.b16 %v389, %v388
    %v505 = vpack.c.b16 %v391, %v390
    %v506 = vpack.c.b16 %v393, %v392
    %v507 = vpack.c.b16 %v395, %v394
    %v508 = vpack.c.b16 %v397, %v396
    %v509 = vpack.c.b16 %v399, %v398
    %v510 = vpack.c.b16 %v401, %v400
    %v511 = vpack.c.b16 %v403, %v402
    %v512 = vpack.c.b16 %v405, %v404
    %v513 = vpack.c.b16 %v407, %v406
    %v514 = vpack.c.b16 %v409, %v408
    %v515 = vpack.c.b16 %v411, %v410
    %v516 = vpack.c.b16 %v413, %v412
    %v517 = vpack.c.b16 %v415, %v414
    %v518 = vpack.c.b16 %v417, %v416
    %v519 = vpack.c.b16 %v419, %v418
    %v520 = vpack.c.b16 %v421, %v420
    %v521 = vpack.c.b16 %v423, %v422
    %v522 = vpack.c.b16 %v425, %v424
    %v523 = vpack.c.b16 %v427, %v426
    %v524 = vpack.c.b16 %v429, %v428
    %v525 = vpack.c.b16 %v431, %v430
    %v526 = vpack.c.b16 %v433, %v432
    %v527 = vpack.c.b16 %v435, %v434
    %v528 = vpack.c.b16 %v437, %v436
    %v529 = vpack.c.b16 %v439, %v438
    %v530 = vpack.c.b16 %v441, %v440
    %v531 = vpack.c.b16 %v443, %v442
    %v532 = vpack.c.b16 %v445, %v444
    %v533 = vpack.c.b16 %v447, %v446
    %v534 = vpack.c.b16 %v449, %v448
    %v535 = vpack.c.b16 %v451, %v450
    %v536 = vpack.c.b16 %v453, %v452
    %v537 = vpack.c.b16 %v455, %v454
    %v538 = vpack.c.b16 %v457, %v456
    %v539 = vpack.c.b16 %v459, %v458
    %v540 = vpack.c.b16 %v461, %v460
    %v541 = vpack.c.b16 %v463, %v462
    %v542 = vpack.c.b16 %v465, %v464
    %v543 = vpack.c.b16 %v467, %v466
    %v544 = vpack.c.b16 %v469, %v468
    %v545 = vpack.c.b16 %v471, %v470
    %v546 = vpack.c.b16 %v473, %v472
    %v547 = vpack.c.b16 %v475, %v474
    %v548 = vpack.c.b16 %v477, %v476
    %v549 = vpack.c.b16 %v479, %v478
    %v550 = vpack.c.b16 %v481, %v480
    %v551 = vpack.c.b16 %v483, %v482
    %v552 = vpack.c.b16 %v485, %v484
    %v553 = vpack.c.b16 %v487, %v486
    %v554 = vpack.c.b16 %v489, %v488
    %v555 = vpack.c.b16 %v491, %v490
    %620 = vmatprep.subr.bf16.mxu0 0
    %621 = vmatpush1.bf16.msra.mxu0 %v499
    %622 = vmatprep.subr.bf16.mxu0 0
    %623 = vmatpush1.bf16.msra.mxu0 %v498
    %624 = vmatprep.subr.bf16.mxu0 0
    %625 = vmatpush1.bf16.msra.mxu0 %v497
    %626 = vmatprep.subr.bf16.mxu0 0
    %627 = vmatpush1.bf16.msra.mxu0 %v496
    %628 = vmatprep.subr.bf16.mxu0 0
    %629 = vmatpush1.bf16.msra.mxu0 %v495
    %630 = vmatprep.subr.bf16.mxu0 0
    %631 = vmatpush1.bf16.msra.mxu0 %v494
    %632 = vmatprep.subr.bf16.mxu0 0
    %633 = vmatpush1.bf16.msra.mxu0 %v493
    %634 = vmatprep.subr.bf16.mxu0 0
    %635 = vmatpush1.bf16.msra.mxu0 %v492
    %636 = vmatprep.subr.bf16.mxu0 0
    %637 = vmatpush2.bf16.msra.mxu0 %v507
    %638 = vmatprep.subr.bf16.mxu0 0
    %639 = vmatpush2.bf16.msra.mxu0 %v506
    %640 = vmatprep.subr.bf16.mxu0 0
    %641 = vmatpush2.bf16.msra.mxu0 %v505
    %642 = vmatprep.subr.bf16.mxu0 0
    %643 = vmatpush2.bf16.msra.mxu0 %v504
    %644 = vmatprep.subr.bf16.mxu0 0
    %645 = vmatpush2.bf16.msra.mxu0 %v503
    %646 = vmatprep.subr.bf16.mxu0 0
    %647 = vmatpush2.bf16.msra.mxu0 %v502
    %648 = vmatprep.subr.bf16.mxu0 0
    %649 = vmatpush2.bf16.msra.mxu0 %v501
    %650 = vmatprep.subr.bf16.mxu0 0
    %651 = vmatpush2.bf16.msra.mxu0 %v500
    %652 = vmatprep.mubr.bf16.mxu0 %v221
    %653 = vmatmul.mubr.bf16.gmra.mxu0 %v220
    %v654 = vpop.f32.mrf.mxu0
    %v655 = vadd.f32 0.0, %v654
    %v656 = vpop.f32.mrf.mxu0
    %v657 = vpop.f32.mrf.mxu0
    %v658 = vadd.f32 0.0, %v657
    %v659 = vpop.f32.mrf.mxu0
    %660 = vdwg.mxu0
    %661 = vmatprep.subr.bf16.mxu0 0
    %662 = vmatpush1.bf16.msra.mxu0 %v515
    %663 = vmatprep.subr.bf16.mxu0 0
    %664 = vmatpush1.bf16.msra.mxu0 %v514
    %665 = vmatprep.subr.bf16.mxu0 0
    %666 = vmatpush1.bf16.msra.mxu0 %v513
    %667 = vmatprep.subr.bf16.mxu0 0
    %668 = vmatpush1.bf16.msra.mxu0 %v512
    %669 = vmatprep.subr.bf16.mxu0 0
    %670 = vmatpush1.bf16.msra.mxu0 %v511
    %671 = vmatprep.subr.bf16.mxu0 0
    %672 = vmatpush1.bf16.msra.mxu0 %v510
    %673 = vmatprep.subr.bf16.mxu0 0
    %674 = vmatpush1.bf16.msra.mxu0 %v509
    %675 = vmatprep.subr.bf16.mxu0 0
    %676 = vmatpush1.bf16.msra.mxu0 %v508
    %677 = vmatprep.subr.bf16.mxu0 0
    %678 = vmatpush2.bf16.msra.mxu0 %v523
    %679 = vmatprep.subr.bf16.mxu0 0
    %680 = vmatpush2.bf16.msra.mxu0 %v522
    %681 = vmatprep.subr.bf16.mxu0 0
    %682 = vmatpush2.bf16.msra.mxu0 %v521
    %683 = vmatprep.subr.bf16.mxu0 0
    %684 = vmatpush2.bf16.msra.mxu0 %v520
    %685 = vmatprep.subr.bf16.mxu0 0
    %686 = vmatpush2.bf16.msra.mxu0 %v519
    %687 = vmatprep.subr.bf16.mxu0 0
    %688 = vmatpush2.bf16.msra.mxu0 %v518
    %689 = vmatprep.subr.bf16.mxu0 0
    %690 = vmatpush2.bf16.msra.mxu0 %v517
    %691 = vmatprep.subr.bf16.mxu0 0
    %692 = vmatpush2.bf16.msra.mxu0 %v516
    %693 = vmatprep.mubr.bf16.mxu0 %v223
    %694 = vmatmul.mubr.bf16.gmra.mxu0 %v222
    %v695 = vpop.f32.mrf.mxu0
    %v696 = vadd.f32 %v655, %v695
    %v697 = vpop.f32.mrf.mxu0
    %v698 = vpop.f32.mrf.mxu0
    %v699 = vadd.f32 %v658, %v698
    %v700 = vpop.f32.mrf.mxu0
    %701 = vdwg.mxu0
    %702 = vmatprep.subr.bf16.mxu0 0
    %703 = vmatpush1.bf16.msra.mxu0 %v531
    %704 = vmatprep.subr.bf16.mxu0 0
    %705 = vmatpush1.bf16.msra.mxu0 %v530
    %706 = vmatprep.subr.bf16.mxu0 0
    %707 = vmatpush1.bf16.msra.mxu0 %v529
    %708 = vmatprep.subr.bf16.mxu0 0
    %709 = vmatpush1.bf16.msra.mxu0 %v528
    %710 = vmatprep.subr.bf16.mxu0 0
    %711 = vmatpush1.bf16.msra.mxu0 %v527
    %712 = vmatprep.subr.bf16.mxu0 0
    %713 = vmatpush1.bf16.msra.mxu0 %v526
    %714 = vmatprep.subr.bf16.mxu0 0
    %715 = vmatpush1.bf16.msra.mxu0 %v525
    %716 = vmatprep.subr.bf16.mxu0 0
    %717 = vmatpush1.bf16.msra.mxu0 %v524
    %718 = vmatprep.subr.bf16.mxu0 0
    %719 = vmatpush2.bf16.msra.mxu0 %v539
    %720 = vmatprep.subr.bf16.mxu0 0
    %721 = vmatpush2.bf16.msra.mxu0 %v538
    %722 = vmatprep.subr.bf16.mxu0 0
    %723 = vmatpush2.bf16.msra.mxu0 %v537
    %724 = vmatprep.subr.bf16.mxu0 0
    %725 = vmatpush2.bf16.msra.mxu0 %v536
    %726 = vmatprep.subr.bf16.mxu0 0
    %727 = vmatpush2.bf16.msra.mxu0 %v535
    %728 = vmatprep.subr.bf16.mxu0 0
    %729 = vmatpush2.bf16.msra.mxu0 %v534
    %730 = vmatprep.subr.bf16.mxu0 0
    %731 = vmatpush2.bf16.msra.mxu0 %v533
    %732 = vmatprep.subr.bf16.mxu0 0
    %733 = vmatpush2.bf16.msra.mxu0 %v532
    %734 = vmatprep.mubr.bf16.mxu0 %v225
    %735 = vmatmul.mubr.bf16.gmra.mxu0 %v224
    %v736 = vpop.f32.mrf.mxu0
    %v737 = vadd.f32 %v696, %v736
    %v738 = vpop.f32.mrf.mxu0
    %v739 = vpop.f32.mrf.mxu0
    %v740 = vadd.f32 %v699, %v739
    %v741 = vpop.f32.mrf.mxu0
    %742 = vdwg.mxu0
    %743 = vmatprep.subr.bf16.mxu0 0
    %744 = vmatpush1.bf16.msra.mxu0 %v547
    %745 = vmatprep.subr.bf16.mxu0 0
    %746 = vmatpush1.bf16.msra.mxu0 %v546
    %747 = vmatprep.subr.bf16.mxu0 0
    %748 = vmatpush1.bf16.msra.mxu0 %v545
    %749 = vmatprep.subr.bf16.mxu0 0
    %750 = vmatpush1.bf16.msra.mxu0 %v544
    %751 = vmatprep.subr.bf16.mxu0 0
    %752 = vmatpush1.bf16.msra.mxu0 %v543
    %753 = vmatprep.subr.bf16.mxu0 0
    %754 = vmatpush1.bf16.msra.mxu0 %v542
    %755 = vmatprep.subr.bf16.mxu0 0
    %756 = vmatpush1.bf16.msra.mxu0 %v541
    %757 = vmatprep.subr.bf16.mxu0 0
    %758 = vmatpush1.bf16.msra.mxu0 %v540
    %759 = vmatprep.subr.bf16.mxu0 0
    %760 = vmatpush2.bf16.msra.mxu0 %v555
    %761 = vmatprep.subr.bf16.mxu0 0
    %762 = vmatpush2.bf16.msra.mxu0 %v554
    %763 = vmatprep.subr.bf16.mxu0 0
    %764 = vmatpush2.bf16.msra.mxu0 %v553
    %765 = vmatprep.subr.bf16.mxu0 0
    %766 = vmatpush2.bf16.msra.mxu0 %v552
    %767 = vmatprep.subr.bf16.mxu0 0
    %768 = vmatpush2.bf16.msra.mxu0 %v551
    %769 = vmatprep.subr.bf16.mxu0 0
    %770 = vmatpush2.bf16.msra.mxu0 %v550
    %771 = vmatprep.subr.bf16.mxu0 0
    %772 = vmatpush2.bf16.msra.mxu0 %v549
    %773 = vmatprep.subr.bf16.mxu0 0
    %774 = vmatpush2.bf16.msra.mxu0 %v548
    %775 = vmatprep.mubr.bf16.mxu0 %v227
    %776 = vmatmul.mubr.bf16.gmra.mxu0 %v226
    %v777 = vpop.f32.mrf.mxu0
    %v778 = vadd.f32 %v737, %v777
    %v779 = vpop.f32.mrf.mxu0
    %v780 = vpop.f32.mrf.mxu0
    %v781 = vadd.f32 %v740, %v780
    %v782 = vpop.f32.mrf.mxu0
    %783 = vdwg.mxu0
    %v784 = vld [vmem:[%s2] sm:$0x1]
    %v786 = vlaneseq
    %v787 = vshrl.u32 %v786, 7
    %v788 = vsub.s32 0, %v787
    %v789 = vrot.slane %v784, %v788
    %v791 = vsub.f32 %v789, %v778
    %v792 = vsub.f32 %v789, %v781
    %v793 = vlaneseq
    %v794 = vand.u32 %v793, 127
    %v795 = vcvt.s32.f32 %v794
    %796 = vmin.xlane.f32.xlu0 %v791
    %v797 = vpop.xlane.xlu0 %796
    %798 = vmin.xlane.f32.xlu0 %v792
    %v799 = vpop.xlane.xlu0 %798
    %vm800 = vcmp.le.f32.partialorder %v791, %v797
    %vm801 = vcmp.le.f32.partialorder %v792, %v799
    %v802 = vsel %vm800, %v795, 128.0
    %v803 = vsel %vm801, %v795, 128.0
    %804 = vmin.xlane.f32.xlu0 %v802
    %v805 = vpop.xlane.xlu0 %804
    %806 = vmin.xlane.f32.xlu0 %v803
    %v807 = vpop.xlane.xlu0 %806
    %vm808 = vcmp.eq.f32.partialorder %v795, %v805
    %vm809 = vcmp.eq.f32.partialorder %v795, %v807
    %v810 = vsel %vm808, 1, 0
    %v811 = vsel %vm809, 1, 0
    %v812 = vcvt.s32.f32 %v810
    %v813 = vcvt.s32.f32 %v811
    %v814 = vadd.f32 %v812, 0.0
    %v815 = vadd.f32 %v813, 0.0
    %v816 = vsel %vm808, 3e+38, %v791
    %v817 = vsel %vm809, 3e+38, %v792
    %818 = vmin.xlane.f32.xlu0 %v816
    %v819 = vpop.xlane.xlu0 %818
    %820 = vmin.xlane.f32.xlu0 %v817
    %v821 = vpop.xlane.xlu0 %820
    %vm822 = vcmp.le.f32.partialorder %v816, %v819
    %vm823 = vcmp.le.f32.partialorder %v817, %v821
    %v824 = vsel %vm822, %v795, 128.0
    %v825 = vsel %vm823, %v795, 128.0
    %826 = vmin.xlane.f32.xlu0 %v824
    %v827 = vpop.xlane.xlu0 %826
    %828 = vmin.xlane.f32.xlu0 %v825
    %v829 = vpop.xlane.xlu0 %828
    %vm830 = vcmp.eq.f32.partialorder %v795, %v827
    %vm831 = vcmp.eq.f32.partialorder %v795, %v829
    %v832 = vsel %vm830, 1, 0
    %v833 = vsel %vm831, 1, 0
    %v834 = vcvt.s32.f32 %v832
    %v835 = vcvt.s32.f32 %v833
    %v836 = vadd.f32 %v814, %v834
    %v837 = vadd.f32 %v815, %v835
    %v838 = vsel %vm830, 3e+38, %v816
    %v839 = vsel %vm831, 3e+38, %v817
    %840 = vmin.xlane.f32.xlu0 %v838
    %v841 = vpop.xlane.xlu0 %840
    %842 = vmin.xlane.f32.xlu0 %v839
    %v843 = vpop.xlane.xlu0 %842
    %vm844 = vcmp.le.f32.partialorder %v838, %v841
    %vm845 = vcmp.le.f32.partialorder %v839, %v843
    %v846 = vsel %vm844, %v795, 128.0
    %v847 = vsel %vm845, %v795, 128.0
    %848 = vmin.xlane.f32.xlu0 %v846
    %v849 = vpop.xlane.xlu0 %848
    %850 = vmin.xlane.f32.xlu0 %v847
    %v851 = vpop.xlane.xlu0 %850
    %vm852 = vcmp.eq.f32.partialorder %v795, %v849
    %vm853 = vcmp.eq.f32.partialorder %v795, %v851
    %v854 = vsel %vm852, 1, 0
    %v855 = vsel %vm853, 1, 0
    %v856 = vcvt.s32.f32 %v854
    %v857 = vcvt.s32.f32 %v855
    %v858 = vadd.f32 %v836, %v856
    %v859 = vadd.f32 %v837, %v857
    %v860 = vsel %vm852, 3e+38, %v838
    %v861 = vsel %vm853, 3e+38, %v839
    %862 = vmin.xlane.f32.xlu0 %v860
    %v863 = vpop.xlane.xlu0 %862
    %864 = vmin.xlane.f32.xlu0 %v861
    %v865 = vpop.xlane.xlu0 %864
    %vm866 = vcmp.le.f32.partialorder %v860, %v863
    %vm867 = vcmp.le.f32.partialorder %v861, %v865
    %v868 = vsel %vm866, %v795, 128.0
    %v869 = vsel %vm867, %v795, 128.0
    %870 = vmin.xlane.f32.xlu0 %v868
    %v871 = vpop.xlane.xlu0 %870
    %872 = vmin.xlane.f32.xlu0 %v869
    %v873 = vpop.xlane.xlu0 %872
    %vm874 = vcmp.eq.f32.partialorder %v795, %v871
    %vm875 = vcmp.eq.f32.partialorder %v795, %v873
    %v876 = vsel %vm874, 1, 0
    %v877 = vsel %vm875, 1, 0
    %v878 = vcvt.s32.f32 %v876
    %v879 = vcvt.s32.f32 %v877
    %v880 = vadd.f32 %v858, %v878
    %v881 = vadd.f32 %v859, %v879
    %v882 = vsel %vm874, 3e+38, %v860
    %v883 = vsel %vm875, 3e+38, %v861
    %884 = vmin.xlane.f32.xlu0 %v882
    %v885 = vpop.xlane.xlu0 %884
    %886 = vmin.xlane.f32.xlu0 %v883
    %v887 = vpop.xlane.xlu0 %886
    %vm888 = vcmp.le.f32.partialorder %v882, %v885
    %vm889 = vcmp.le.f32.partialorder %v883, %v887
    %v890 = vsel %vm888, %v795, 128.0
    %v891 = vsel %vm889, %v795, 128.0
    %892 = vmin.xlane.f32.xlu0 %v890
    %v893 = vpop.xlane.xlu0 %892
    %894 = vmin.xlane.f32.xlu0 %v891
    %v895 = vpop.xlane.xlu0 %894
    %vm896 = vcmp.eq.f32.partialorder %v795, %v893
    %vm897 = vcmp.eq.f32.partialorder %v795, %v895
    %v898 = vsel %vm896, 1, 0
    %v899 = vsel %vm897, 1, 0
    %v900 = vcvt.s32.f32 %v898
    %v901 = vcvt.s32.f32 %v899
    %v902 = vadd.f32 %v880, %v900
    %v903 = vadd.f32 %v881, %v901
    %v904 = vld [vmem:[#allocation7] sm:$0xff]
    %v905 = vld [vmem:[#allocation7 + $0x8] sm:$0xff]
    %v906 = vld [vmem:[#allocation7 + $0x10] sm:$0xff]
    %v907 = vld [vmem:[#allocation7 + $0x18] sm:$0xff]
    %v908 = vld [vmem:[#allocation7 + $0x20] sm:$0xff]
    %v909 = vld [vmem:[#allocation7 + $0x28] sm:$0xff]
    %v910 = vld [vmem:[#allocation7 + $0x30] sm:$0xff]
    %v911 = vld [vmem:[#allocation7 + $0x38] sm:$0xff]
    %v912 = vld [vmem:[#allocation7 + $0x40] sm:$0xff]
    %v913 = vld [vmem:[#allocation7 + $0x48] sm:$0xff]
    %v914 = vld [vmem:[#allocation7 + $0x50] sm:$0xff]
    %v915 = vld [vmem:[#allocation7 + $0x58] sm:$0xff]
    %v916 = vld [vmem:[#allocation7 + $0x60] sm:$0xff]
    %v917 = vld [vmem:[#allocation7 + $0x68] sm:$0xff]
    %v918 = vld [vmem:[#allocation7 + $0x70] sm:$0xff]
    %v919 = vld [vmem:[#allocation7 + $0x78] sm:$0xff]
    %920 = vmatprep.subr.mxu0 0.0
    %921 = vmatpush1.msra.mxu0 %v919
    %922 = vmatprep.subr.mxu0 0.0
    %923 = vmatpush1.msra.mxu0 %v918
    %924 = vmatprep.subr.mxu0 0.0
    %925 = vmatpush1.msra.mxu0 %v917
    %926 = vmatprep.subr.mxu0 0.0
    %927 = vmatpush1.msra.mxu0 %v916
    %928 = vmatprep.subr.mxu0 0.0
    %929 = vmatpush1.msra.mxu0 %v915
    %930 = vmatprep.subr.mxu0 0.0
    %931 = vmatpush1.msra.mxu0 %v914
    %932 = vmatprep.subr.mxu0 0.0
    %933 = vmatpush1.msra.mxu0 %v913
    %934 = vmatprep.subr.mxu0 0.0
    %935 = vmatpush1.msra.mxu0 %v912
    %936 = vmatprep.subr.mxu0 0.0
    %937 = vmatpush1.msra.mxu0 %v911
    %938 = vmatprep.subr.mxu0 0.0
    %939 = vmatpush1.msra.mxu0 %v910
    %940 = vmatprep.subr.mxu0 0.0
    %941 = vmatpush1.msra.mxu0 %v909
    %942 = vmatprep.subr.mxu0 0.0
    %943 = vmatpush1.msra.mxu0 %v908
    %944 = vmatprep.subr.mxu0 0.0
    %945 = vmatpush1.msra.mxu0 %v907
    %946 = vmatprep.subr.mxu0 0.0
    %947 = vmatpush1.msra.mxu0 %v906
    %948 = vmatprep.subr.mxu0 0.0
    %949 = vmatpush1.msra.mxu0 %v905
    %950 = vmatprep.subr.mxu0 0.0
    %951 = vmatpush1.msra.mxu0 %v904
    %952 = vmatprep.subr.mxu0 0.0
    %953 = vmatpush2.msra.mxu0 0.0
    %954 = vmatprep.subr.mxu0 0.0
    %955 = vmatpush2.msra.mxu0 0.0
    %956 = vmatprep.subr.mxu0 0.0
    %957 = vmatpush2.msra.mxu0 0.0
    %958 = vmatprep.subr.mxu0 0.0
    %959 = vmatpush2.msra.mxu0 0.0
    %960 = vmatprep.subr.mxu0 0.0
    %961 = vmatpush2.msra.mxu0 0.0
    %962 = vmatprep.subr.mxu0 0.0
    %963 = vmatpush2.msra.mxu0 0.0
    %964 = vmatprep.subr.mxu0 0.0
    %965 = vmatpush2.msra.mxu0 0.0
    %966 = vmatprep.subr.mxu0 0.0
    %967 = vmatpush2.msra.mxu0 0.0
    %968 = vmatprep.subr.mxu0 0.0
    %969 = vmatpush2.msra.mxu0 0.0
    %970 = vmatprep.subr.mxu0 0.0
    %971 = vmatpush2.msra.mxu0 0.0
    %972 = vmatprep.subr.mxu0 0.0
    %973 = vmatpush2.msra.mxu0 0.0
    %974 = vmatprep.subr.mxu0 0.0
    %975 = vmatpush2.msra.mxu0 0.0
    %976 = vmatprep.subr.mxu0 0.0
    %977 = vmatpush2.msra.mxu0 0.0
    %978 = vmatprep.subr.mxu0 0.0
    %979 = vmatpush2.msra.mxu0 0.0
    %980 = vmatprep.subr.mxu0 0.0
    %981 = vmatpush2.msra.mxu0 0.0
    %982 = vmatprep.subr.mxu0 0.0
    %983 = vmatpush2.msra.mxu0 0.0
    %984 = vmatprep.mubr.f32.mxu0 0.0
    %985 = vmatmul.mubr.f32.gmra.mxu0 %v902
    %v986 = vpop.f32.mrf.mxu0
    %v987 = vadd.f32 0.0, %v986
    %v988 = vpop.f32.mrf.mxu0
    %989 = vmatprep.mubr.f32.mxu0 0.0
    %990 = vmatmul.mubr.f32.gmra.mxu0 %v903
    %v991 = vpop.f32.mrf.mxu0
    %v992 = vadd.f32 0.0, %v991
    %v993 = vpop.f32.mrf.mxu0
    %994 = vdwg.mxu0
    %v995 = vmul.f32 %v987, 0.2
    %v996 = vmul.f32 %v992, 0.2
    %997 = vst [vmem:[#allocation8] sm:$0xff] %v995
    %998 = vst [vmem:[#allocation8 + $0x8] sm:$0xff] %v996
    // Predicated region
    $region30: #{tpu_custom_call.1} parent=1 // pred_check
      _
    $region31: #{tpu_custom_call.1} parent=1 // pred_check_branch
      %1000 = sbr.rel (0) target = $region33
    $region32: #{tpu_custom_call.1} parent=1 // pred_region
      %s1002 = ssub.s32 256, 256
      %1003 = vsyncadd [#allocation4], %s1002
      %s1004 = sshll.u32 [#allocation8], 4
      %s1005 = int_to_ptr.vmem [resolvable:$true] %s1004
      %1010 = dma.vmem_to_hbm [thread:$0]  %s1005, 256, %s4, [#allocation4], 128, 128, 8
    $region33: #{tpu_custom_call.1} parent=1 // pred_fallthru
      _
    // Predicated region
    $region34: #{tpu_custom_call.1} parent=1 // pred_check
      _
    $region35: #{tpu_custom_call.1} parent=1 // pred_check_branch
      %1012 = sbr.rel (0) target = $region37
    $region36: #{tpu_custom_call.1} parent=1 // pred_region
      %1013 = dma.done [#allocation4], 256
    $region37: #{tpu_custom_call.1} parent=1 // pred_fallthru
      _
    %1014 = vsyncpa [#allocation3], 1
    %1015 = vsyncpa [#allocation6], 1
    %1016 = vsyncpa [#allocation4], 1

</llo_original>
